<compile_context>
chip_gen: v7x
topology: tpu7x:2x2x1
jax: 0.10.0
libtpu: 0.0.40
codegen_flags: <defaults>
</compile_context>

<pallas_src>
import jax
import jax.numpy as jnp
from jax.experimental import pallas as pl
from jax.experimental.pallas import tpu as pltpu

_LANE = 128
_SUBLANE = 8


def _vmem_targets():
    """(per-input padded tile target bytes, scoped-VMEM limit bytes)."""
    cap = 64 << 20  # conservative fallback: v7x per-TensorCore physical VMEM
    try:
        cap = int(pltpu.get_tpu_info().vmem_capacity_bytes)
    except Exception:
        pass
    # Keep 2 inputs x 2 pipeline buffers at ~1/4 of physical VMEM, tile capped
    # at 8 MiB (v5e/v6e: 8 MiB tiles, v7x: 4 MiB tiles).
    target_tile = min(max(1 << 20, cap // 16), 8 << 20)
    vmem_limit = min(max(cap // 2, 4 * target_tile + (4 << 20)), 48 << 20)
    return target_tile, vmem_limit


def _make_l2_partial_kernel(L, Lt, needs_mask):
    def kernel(out_ref, tgt_ref, part_ref):
        # out_ref / tgt_ref: (1, C, Lt) tiles; Lt is a multiple of 128.
        x = out_ref[...].astype(jnp.float32)
        t = tgt_ref[...].astype(jnp.float32)
        diff = x - t                                           # (1, C, Lt)

        if needs_mask:
            # Mask lanes past the end of the (unpadded) spatial axis.  Applied
            # to diff BEFORE squaring: Pallas edge-block contents beyond the
            # array end are unspecified (possibly NaN/Inf) and must not poison
            # the reduction.
            lane = jax.lax.broadcasted_iota(jnp.int32, diff.shape, 2)
            valid = (pl.program_id(1) * Lt + lane) < L
            diff = jnp.where(valid, diff, jnp.float32(0.0))

        sq_sum = jnp.sum(diff * diff, axis=1)                  # (1, Lt) over C
        s = jnp.sum(jnp.sqrt(sq_sum))                          # partial sum of per-pixel norms

        # Embed the scalar partial into [0, 0] of this step's own (8, 128)
        # output block (rest zeros) so the wrapper can just jnp.sum the array.
        i = jax.lax.broadcasted_iota(jnp.int32, part_ref.shape, 0)
        j = jax.lax.broadcasted_iota(jnp.int32, part_ref.shape, 1)
        part_ref[...] = jnp.where((i == 0) & (j == 0), s, jnp.float32(0.0))

    return kernel


def l2_loss(output, target):
    """Pallas equivalent of torch.norm(output - target, p=2, dim=1).mean()."""
    assert output.shape == target.shape
    B, C, H, W = output.shape
    L = H * W

    # Free view for contiguous NCHW: spatial dims flattened onto the lane axis.
    x = output.reshape(B, C, L)
    y = target.reshape(B, C, L)

    itemsize = jnp.dtype(output.dtype).itemsize
    sublane_pack = 8 * max(1, 4 // itemsize)            # f32 -> 8, bf16 -> 16
    c_pad = pl.cdiv(C, sublane_pack) * sublane_pack      # physical sublane rows

    target_tile_bytes, vmem_limit_bytes = _vmem_targets()
    max_lt = max(_LANE,
                 (target_tile_bytes // (c_pad * itemsize)) // _LANE * _LANE)

    n_chunks = pl.cdiv(L, _LANE)                         # 128-lane spatial chunks
    lt_cap = max(1, max_lt // _LANE)
    if B >= 2:
        lt_chunks = min(lt_cap, n_chunks)
    else:
        # Ensure >= 2 grid steps so both v7x TensorCores get balanced work.
        lt_chunks = min(lt_cap, max(1, pl.cdiv(n_chunks, 2)))
    Lt = lt_chunks * _LANE
    NL = pl.cdiv(L, Lt)
    needs_mask = (L % Lt) != 0

    out_bytes = B * NL * _SUBLANE * _LANE * 4
    cost = pl.CostEstimate(
        flops=3 * B * C * L,
        transcendentals=B * L,
        bytes_accessed=2 * B * C * L * itemsize + out_bytes,
    )

    partials = pl.pallas_call(
        _make_l2_partial_kernel(L, Lt, needs_mask),
        out_shape=jax.ShapeDtypeStruct((B * _SUBLANE, NL * _LANE), jnp.float32),
        grid_spec=pltpu.PrefetchScalarGridSpec(
            num_scalar_prefetch=0,
            grid=(B, NL),
            in_specs=[
                pl.BlockSpec((1, C, Lt), lambda b, l: (b, 0, l)),
                pl.BlockSpec((1, C, Lt), lambda b, l: (b, 0, l)),
            ],
            out_specs=pl.BlockSpec((_SUBLANE, _LANE), lambda b, l: (b, l)),
        ),
        compiler_params=pltpu.CompilerParams(
            # Every grid step writes a distinct output block -> fully parallel
            # (engages both TensorCores on v7x; no-op on v5e/v6e).
            dimension_semantics=("parallel", "parallel"),
            vmem_limit_bytes=vmem_limit_bytes,
        ),
        cost_estimate=cost,
    )(x, y)

    # Final tiny reduction + mean with the static B*H*W normalizer.
    return jnp.sum(partials) / jnp.float32(B * H * W)


def l2_loss_ref(output, target):
    diff = output.astype(jnp.float32) - target.astype(jnp.float32)
    return jnp.mean(jnp.sqrt(jnp.sum(diff * diff, axis=1)))


if __name__ == "__main__":
    key = jax.random.PRNGKey(0)

    # Primary check: shapes consistent with the module (B=2, C=4, 16x16).
    k1, k2, k3, k4, k5, k6 = jax.random.split(key, 6)
    B, C, H, W = 2, 4, 16, 16
    output = jax.random.normal(k1, (B, C, H, W), dtype=jnp.float32)
    target = jax.random.normal(k2, (B, C, H, W), dtype=jnp.float32)

    loss = jax.jit(l2_loss)(output, target)
    jax.block_until_ready(loss)
    ref = l2_loss_ref(output, target)
    assert jnp.allclose(loss, ref, rtol=1e-5, atol=1e-5), (loss, ref)

    # Secondary check: spatial size not a multiple of 128 (exercises the
    # in-kernel remainder masking, no jnp.pad copies).
    B2, C2, H2, W2 = 2, 2, 12, 20
    out2 = jax.random.normal(k3, (B2, C2, H2, W2), dtype=jnp.float32)
    tgt2 = jax.random.normal(k4, (B2, C2, H2, W2), dtype=jnp.float32)
    loss2 = jax.jit(l2_loss)(out2, tgt2)
    jax.block_until_ready(loss2)
    ref2 = l2_loss_ref(out2, tgt2)
    assert jnp.allclose(loss2, ref2, rtol=1e-5, atol=1e-5), (loss2, ref2)

    # Tertiary check: bf16 inputs (dtype-derived tile sizing, f32 accumulate).
    out3 = jax.random.normal(k5, (2, 4, 16, 24), dtype=jnp.bfloat16)
    tgt3 = jax.random.normal(k6, (2, 4, 16, 24), dtype=jnp.bfloat16)
    loss3 = jax.jit(l2_loss)(out3, tgt3)
    jax.block_until_ready(loss3)
    ref3 = l2_loss_ref(out3, tgt3)
    assert jnp.allclose(loss3, ref3, rtol=1e-2, atol=1e-2), (loss3, ref3)

    print("KERNEL_OK")
</pallas_src>

<mosaic_0001>
module attributes {stable_mosaic.version = 11 : i64} {
  func.func @kernel(%arg0: i32, %arg1: i32, %arg2: memref<1x4x256xf32, #tpu.memory_space<vmem>>, %arg3: memref<1x4x256xf32, #tpu.memory_space<vmem>>, %arg4: memref<8x128xf32, #tpu.memory_space<vmem>>) attributes {dimension_semantics = [#tpu.dimension_semantics<parallel>, #tpu.dimension_semantics<parallel>], iteration_bounds = array<i64: 2, 1>, scalar_prefetch = 0 : i64, scratch_operands = 0 : i64, tpu.core_type = #tpu.core_type<tc>, window_params = [{transform_indices = @transform_0, window_bounds = array<i64: 1, 4, 256>}, {transform_indices = @transform_1, window_bounds = array<i64: 1, 4, 256>}, {transform_indices = @transform_2, window_bounds = array<i64: 8, 128>}]} {
    %c0 = arith.constant 0 : index
    %c0_0 = arith.constant 0 : index
    %c0_1 = arith.constant 0 : index
    %0 = vector.load %arg2[%c0, %c0_0, %c0_1] : memref<1x4x256xf32, #tpu.memory_space<vmem>>, vector<1x4x256xf32>
    %c0_2 = arith.constant 0 : index
    %c0_3 = arith.constant 0 : index
    %c0_4 = arith.constant 0 : index
    %1 = vector.load %arg3[%c0_2, %c0_3, %c0_4] : memref<1x4x256xf32, #tpu.memory_space<vmem>>, vector<1x4x256xf32>
    %2 = arith.subf %0, %1 : vector<1x4x256xf32>
    %3 = arith.mulf %2, %2 : vector<1x4x256xf32>
    %cst = arith.constant dense<0.000000e+00> : vector<1x256xf32>
    %4 = vector.multi_reduction <add>, %3, %cst [1] : vector<1x4x256xf32> to vector<1x256xf32>
    %5 = math.sqrt %4 : vector<1x256xf32>
    %6 = vector.shape_cast %5 : vector<1x256xf32> to vector<1x1x256xf32>
    %cst_5 = arith.constant dense<0.000000e+00> : vector<1xf32>
    %7 = vector.multi_reduction <add>, %6, %cst_5 [1, 2] : vector<1x1x256xf32> to vector<1xf32>
    %8 = vector.shape_cast %7 : vector<1xf32> to vector<1x1x1xf32>
    %9 = vector.extract %8[0, 0, 0] : f32 from vector<1x1x1xf32>
    %10 = tpu.iota {dimensions = array<i32: 0>} : vector<8x128xi32>
    %11 = tpu.iota {dimensions = array<i32: 1>} : vector<8x128xi32>
    %c0_i32 = arith.constant 0 : i32
    %12 = vector.broadcast %c0_i32 : i32 to vector<8x128xi32>
    %13 = arith.cmpi eq, %10, %12 : vector<8x128xi32>
    %c0_i32_6 = arith.constant 0 : i32
    %14 = vector.broadcast %c0_i32_6 : i32 to vector<8x128xi32>
    %15 = arith.cmpi eq, %11, %14 : vector<8x128xi32>
    %16 = arith.andi %13, %15 : vector<8x128xi1>
    %cst_7 = arith.constant 0.000000e+00 : f32
    %17 = vector.broadcast %9 : f32 to vector<8x128xf32>
    %18 = vector.broadcast %cst_7 : f32 to vector<8x128xf32>
    %19 = arith.select %16, %17, %18 : vector<8x128xi1>, vector<8x128xf32>
    %c0_8 = arith.constant 0 : index
    %c0_9 = arith.constant 0 : index
    %20 = vector.load %arg4[%c0_8, %c0_9] : memref<8x128xf32, #tpu.memory_space<vmem>>, vector<8x128xf32>
    tpu.vector_store %arg4[%c0_8, %c0_9], %19 {strides = array<i32>} : memref<8x128xf32, #tpu.memory_space<vmem>>, vector<8x128xf32>,
    return
  }
  func.func @transform_0(%arg0: i32, %arg1: i32) -> (i32, i32, i32) {
    %c0_i32 = arith.constant 0 : i32
    %c0_i32_0 = arith.constant 0 : i32
    return %arg0, %c0_i32, %arg1 : i32, i32, i32
  }
  func.func @transform_1(%arg0: i32, %arg1: i32) -> (i32, i32, i32) {
    %c0_i32 = arith.constant 0 : i32
    %c0_i32_0 = arith.constant 0 : i32
    return %arg0, %c0_i32, %arg1 : i32, i32, i32
  }
  func.func @transform_2(%arg0: i32, %arg1: i32) -> (i32, i32) {
    %c0_i32 = arith.constant 0 : i32
    return %arg0, %arg1 : i32, i32
  }
}

</mosaic_0001>

<llo_original>
// kernel: l2_loss.1
$region0: #{l2_loss.1}
  #allocation0 [shape = 'u32[]', space=smem, size = 0x4, offset = 0x4, fixed_abs, tag = 'smem constant byte address 0x4 - core index']
  #allocation1 [shape = 'u32[144,128]{1,0:T(1,128)}', space=vmem, size = 0x12000, scoped, tag = 'internal scratch']
  %s0 = inlined_call_operand.vmem [shape: f32[2,4,256], index: 0, kind: input, shape index: {}]
  %s1 = inlined_call_operand.vmem [shape: f32[2,4,256], index: 1, kind: input, shape index: {}]
  %s2 = inlined_call_operand.vmem [shape: f32[16,128], index: 2, kind: output, shape index: {}]
  %s3 = sld [smem:[#allocation0]]
  $region41: #{l2_loss.1} parent=0
    _
  %s5 = ssub.s32 1, %s3
  %s6 = scalar_select 0, %s5, %s3
  loop: start=0, step=1, limit=4
  $region2: #{l2_loss.1} parent=0 // loop_pre_header
    _
  $region3: #{l2_loss.1} parent=0 // loop_header
    %s8 = sphi 0, %s12
    %p9 = scmp.ge.s32.totalorder %s8, 4
    %s15 = sphi 0, %s27
    %s16 = sphi 0, %s23
    %s17 = sphi 0, %s15
    %s18 = sphi 0, %s16
    %s19 = sphi 0, %s17
    %s20 = sphi 0, %s18
    %s32 = sphi 0, %s34
    %s35 = sphi 0, %s32
    %s36 = sphi 0, %s35
    %s52 = sphi 0, %s36
    %s60 = sphi 0, %s62
    %s63 = sphi 0, %s60
    %s64 = sphi 0, %s63
    %s80 = sphi 0, %s64
    %s88 = sphi 0, %s90
    %s91 = sphi 0, %s88
    %s92 = sphi 0, %s91
    %s108 = sphi 0, %s92
  $region4: #{l2_loss.1} parent=0 // loop_header_branch
    %11 = sbr.rel (%p9) target = $region8
  $region5: #{l2_loss.1} parent=0 // loop_body
    %s13 = ssub.s32 %s8, 1
    %s14 = ssub.s32 %s8, 2
    %s21 = sadd.s32 1, %s16
    %p22 = scmp.ge.s32.totalorder %s21, 1
    %s23 = scalar_select %p22, 0, %s21
    %s24 = sadd.s32 1, %s15
    %s25 = scalar_select %p22, %s24, %s15
    %p26 = scmp.ge.s32.totalorder %s25, 2
    %s27 = scalar_select %p26, 0, %s25
    %s28 = ssub.s32 %s15, %s27
    %s29 = ssub.s32 %s16, %s23
    %s30 = sor.u32 %s28, %s29
    %p31 = scmp.eq.s32.totalorder %s30, 0
    %s33 = sadd.s32 %s32, 1
    %s34 = scalar_select %p31, %s32, %s33
    %p37 = pneg %p31
    %p38 = scmp.eq.s32.totalorder %s8, 1
    %p39 = por %p37, %p38
    %p40 = scmp.ne.s32.totalorder %s32, %s35
    %p41 = scmp.eq.s32.totalorder %s8, 0
    %p42 = por %p40, %p41
    %p43 = scmp.ne.s32.totalorder %s32, %s35
    %p44 = scmp.eq.s32.totalorder %s13, 1
    %p45 = por %p43, %p44
    %p46 = scmp.ne.s32.totalorder %s35, %s36
    %p47 = scmp.eq.s32.totalorder %s13, 0
    %p48 = por %p46, %p47
    %p49 = scmp.ne.s32.totalorder %s35, %s36
    %p50 = scmp.eq.s32.totalorder %s14, 1
    %p51 = por %p49, %p50
    %p53 = scmp.ne.s32.totalorder %s36, %s52
    %p54 = scmp.eq.s32.totalorder %s14, 0
    %p55 = por %p53, %p54
    %s56 = ssub.s32 %s15, %s27
    %s57 = ssub.s32 %s16, %s23
    %s58 = sor.u32 %s56, %s57
    %p59 = scmp.eq.s32.totalorder %s58, 0
    %s61 = sadd.s32 %s60, 1
    %s62 = scalar_select %p59, %s60, %s61
    %p65 = pneg %p59
    %p66 = scmp.eq.s32.totalorder %s8, 1
    %p67 = por %p65, %p66
    %p68 = scmp.ne.s32.totalorder %s60, %s63
    %p69 = scmp.eq.s32.totalorder %s8, 0
    %p70 = por %p68, %p69
    %p71 = scmp.ne.s32.totalorder %s60, %s63
    %p72 = scmp.eq.s32.totalorder %s13, 1
    %p73 = por %p71, %p72
    %p74 = scmp.ne.s32.totalorder %s63, %s64
    %p75 = scmp.eq.s32.totalorder %s13, 0
    %p76 = por %p74, %p75
    %p77 = scmp.ne.s32.totalorder %s63, %s64
    %p78 = scmp.eq.s32.totalorder %s14, 1
    %p79 = por %p77, %p78
    %p81 = scmp.ne.s32.totalorder %s64, %s80
    %p82 = scmp.eq.s32.totalorder %s14, 0
    %p83 = por %p81, %p82
    %s84 = ssub.s32 %s15, %s27
    %s85 = ssub.s32 %s16, %s23
    %s86 = sor.u32 %s84, %s85
    %p87 = scmp.eq.s32.totalorder %s86, 0
    %s89 = sadd.s32 %s88, 1
    %s90 = scalar_select %p87, %s88, %s89
    %p93 = pneg %p87
    %p94 = scmp.eq.s32.totalorder %s8, 1
    %p95 = por %p93, %p94
    %p96 = scmp.ne.s32.totalorder %s88, %s91
    %p97 = scmp.eq.s32.totalorder %s8, 0
    %p98 = por %p96, %p97
    %p99 = scmp.ne.s32.totalorder %s88, %s91
    %p100 = scmp.eq.s32.totalorder %s13, 1
    %p101 = por %p99, %p100
    %p102 = scmp.ne.s32.totalorder %s91, %s92
    %p103 = scmp.eq.s32.totalorder %s13, 0
    %p104 = por %p102, %p103
    %p105 = scmp.ne.s32.totalorder %s91, %s92
    %p106 = scmp.eq.s32.totalorder %s14, 1
    %p107 = por %p105, %p106
    %p109 = scmp.ne.s32.totalorder %s92, %s108
    %p110 = scmp.eq.s32.totalorder %s14, 0
    %p111 = por %p109, %p110
    %p112 = scmp.le.s32.totalorder 1, %s8
    %p113 = scmp.lt.s32.totalorder %s8, 3
    %p114 = pnand %p112, %p113
    %p115 = pneg %p114
    // Predicated region
    $region9: #{l2_loss.1} parent=5 // pred_check
      _
    $region10: #{l2_loss.1} parent=5 // pred_check_branch
      %117 = sbr.rel (%p114) target = $region12
    $region11: #{l2_loss.1} parent=5 // pred_region
      %s118 = ssub.s32 %s8, 1
    $region12: #{l2_loss.1} parent=5 // pred_fallthru
      _
    %p119 = scmp.lt.s32.totalorder %s8, 2
    // Predicated region
    $region13: #{l2_loss.1} parent=5 // pred_check
      %p120 = pneg %p119
    $region14: #{l2_loss.1} parent=5 // pred_check_branch
      %122 = sbr.rel (%p120) target = $region16
    $region15: #{l2_loss.1} parent=5 // pred_region
      // Predicated region
      $region17: #{l2_loss.1} parent=15 // pred_check
        %p123 = pneg %p42
      $region18: #{l2_loss.1} parent=15 // pred_check_branch
        %125 = sbr.rel (%p123) target = $region20
      $region19: #{l2_loss.1} parent=15 // pred_region
        %s126 = smul.u32 2, %s16
        %p127 = scmp.lt.s32.totalorder %s15, 1
        %s128 = scalar_select %p127, %s15, 1
        %p129 = scmp.lt.s32.totalorder %s126, 1
        %s130 = scalar_select %p129, %s126, 1
        %s131 = smul.addr %s128, 2
        %s132 = sadd.s32 %s130, %s131
        %s133 = smul.addr %s132, 4
        %s134 = scalar_lea.vmem %s0, %s133
        %s135 = smul.u32 2, %s16
      $region20: #{l2_loss.1} parent=15 // pred_fallthru
        _
      // Predicated region
      $region21: #{l2_loss.1} parent=15 // pred_check
        %p136 = pneg %p70
      $region22: #{l2_loss.1} parent=15 // pred_check_branch
        %138 = sbr.rel (%p136) target = $region24
      $region23: #{l2_loss.1} parent=15 // pred_region
        %s139 = smul.u32 2, %s16
        %p140 = scmp.lt.s32.totalorder %s15, 1
        %s141 = scalar_select %p140, %s15, 1
        %p142 = scmp.lt.s32.totalorder %s139, 1
        %s143 = scalar_select %p142, %s139, 1
        %s144 = smul.addr %s141, 2
        %s145 = sadd.s32 %s143, %s144
        %s146 = smul.addr %s145, 4
        %s147 = scalar_lea.vmem %s1, %s146
        %s148 = smul.u32 2, %s16
      $region24: #{l2_loss.1} parent=15 // pred_fallthru
        _
    $region16: #{l2_loss.1} parent=5 // pred_fallthru
      _
    %p149 = scmp.le.s32.totalorder 1, %s8
    %p150 = scmp.lt.s32.totalorder %s8, 3
    %p151 = pnand %p149, %p150
    %p152 = pneg %p151
    // Predicated region
    $region25: #{l2_loss.1} parent=5 // pred_check
      _
    $region26: #{l2_loss.1} parent=5 // pred_check_branch
      %154 = sbr.rel (%p151) target = $region28
    $region27: #{l2_loss.1} parent=5 // pred_region
      %s155 = ssub.s32 %s8, 1
      %s156 = smul.u32 2, %s18
      %p157 = scmp.lt.s32.totalorder %s17, 1
      %s158 = scalar_select %p157, %s17, 1
      %p159 = scmp.lt.s32.totalorder %s156, 1
      %s160 = scalar_select %p159, %s156, 1
      %s161 = smul.addr %s158, 2
      %s162 = sadd.s32 %s160, %s161
      %s163 = smul.addr %s162, 4
      %s164 = scalar_lea.vmem %s0, %s163
      %p165 = pneg %p48
      %p166 = pneg %p45
      %s167 = smul.u32 2, %s18
      %p168 = scmp.lt.s32.totalorder %s17, 1
      %s169 = scalar_select %p168, %s17, 1
      %p170 = scmp.lt.s32.totalorder %s167, 1
      %s171 = scalar_select %p170, %s167, 1
      %s172 = smul.addr %s169, 2
      %s173 = sadd.s32 %s171, %s172
      %s174 = smul.addr %s173, 4
      %s175 = scalar_lea.vmem %s1, %s174
      %p176 = pneg %p76
      %p177 = pneg %p73
      %p178 = pneg %p104
      %p179 = pneg %p101
      %p180 = scmp.lt.s32.totalorder %s17, 1
      %s181 = scalar_select %p180, %s17, 1
      %p182 = scmp.lt.s32.totalorder %s18, 0
      %s183 = scalar_select %p182, %s18, 0
      %s184 = sadd.s32 %s183, %s181
      %s185 = smul.addr %s184, 8
      %s186 = scalar_lea.vmem %s2, %s185
      %s187 = smul.u32 2, %s18
      %p188 = scmp.lt.s32.totalorder %s17, 1
      %s189 = scalar_select %p188, %s17, 1
      %p190 = scmp.lt.s32.totalorder %s187, 1
      %s191 = scalar_select %p190, %s187, 1
      %s192 = smul.addr %s189, 2
      %s193 = sadd.s32 %s191, %s192
      %s194 = smul.addr %s193, 4
      %s195 = scalar_lea.vmem %s0, %s194
      %s196 = smul.u32 2, %s18
      %s197 = smul.u32 2, %s18
      %p198 = scmp.lt.s32.totalorder %s17, 1
      %s199 = scalar_select %p198, %s17, 1
      %p200 = scmp.lt.s32.totalorder %s197, 1
      %s201 = scalar_select %p200, %s197, 1
      %s202 = smul.addr %s199, 2
      %s203 = sadd.s32 %s201, %s202
      %s204 = smul.addr %s203, 4
      %s205 = scalar_lea.vmem %s1, %s204
      %s206 = smul.u32 2, %s18
      %p207 = scmp.lt.s32.totalorder %s17, 1
      %s208 = scalar_select %p207, %s17, 1
      %p209 = scmp.lt.s32.totalorder %s18, 0
      %s210 = scalar_select %p209, %s18, 0
      %s211 = sadd.s32 %s210, %s208
      %s212 = smul.addr %s211, 8
      %s213 = scalar_lea.vmem %s2, %s212
      %v214 = vld [vmem:[%s195] sm:$0xff]
      %v215 = vld [vmem:[%s205] sm:$0xff]
      %v216 = vsub.f32 %v214, %v215
      %v217 = vmul.f32 %v216, %v216
      %v219 = vcombine.high %v217, %v217
      %vm221 = vcmask 1043456
      %v222 = vsel %vm221, %v217, 0.0
      %v223 = vrot.slane %v222, 4
      %v224 = vadd.f32 %v222, %v223
      %v225 = vrot.slane %v224, 2
      %v226 = vadd.f32 %v224, %v225
      %v227 = vrot.slane %v226, 1
      %v228 = vadd.f32 %v226, %v227
      %v229 = vsel %vm221, %v219, 0.0
      %v230 = vrot.slane %v229, 4
      %v231 = vadd.f32 %v229, %v230
      %v232 = vrot.slane %v231, 2
      %v233 = vadd.f32 %v231, %v232
      %v234 = vrot.slane %v233, 1
      %v235 = vadd.f32 %v233, %v234
      %v236 = vrsqrt.pop %v228
      %v237 = vmul.f32 %v228, %v236
      %vm238 = vcmp.eq.f32.partialorder %v228, inf
      %v239 = vsel %vm238, %v228, %v237
      %vm240 = vcmp.eq.f32.partialorder %v228, 0.0
      %v241 = vand.u32 %v228, 2147483648
      %v242 = vsel %vm240, %v241, %v239
      %v243 = vrsqrt.pop %v235
      %v244 = vmul.f32 %v235, %v243
      %vm245 = vcmp.eq.f32.partialorder %v235, inf
      %v246 = vsel %vm245, %v235, %v244
      %vm247 = vcmp.eq.f32.partialorder %v235, 0.0
      %v248 = vand.u32 %v235, 2147483648
      %v249 = vsel %vm247, %v248, %v246
      %vm250 = vcmask 1040384
      %v251 = vsel %vm250, %v242, 0.0
      %v252 = vsel %vm250, %v249, 0.0
      %v253 = vadd.f32 %v251, %v252
      %254 = vadd.xlane.f32.xlu0 %v253
      %v255 = vpop.xlane.xlu0 %254
      %v256 = vrot.slane %v255, 4
      %v257 = vadd.f32 %v255, %v256
      %v258 = vrot.slane %v257, 2
      %v259 = vadd.f32 %v257, %v258
      %v260 = vrot.slane %v259, 1
      %v261 = vadd.f32 %v259, %v260
      %s262 = vtos %v261
      %v263 = vlaneseq
      %v264 = vshrl.u32 %v263, 7
      %v265 = vlaneseq
      %v266 = vand.u32 %v265, 127
      %vm267 = vcmp.eq.s32.totalorder %v264, 0
      %vm268 = vcmp.eq.s32.totalorder %v266, 0
      %vm269 = vmand %vm267, %vm268
      %v270 = vstv %s262
      %v271 = vsel %vm269, %v270, 0.0
      %272 = vst [vmem:[%s213] sm:$0xff] %v271
      %p273 = scmp.lt.s32.totalorder %s17, 1
      %s274 = scalar_select %p273, %s17, 1
      %p275 = scmp.lt.s32.totalorder %s18, 0
      %s276 = scalar_select %p275, %s18, 0
      %s277 = sadd.s32 %s276, %s274
      %s278 = smul.addr %s277, 8
      %s279 = scalar_lea.vmem %s2, %s278
      // Predicated region
      $region29: #{l2_loss.1} parent=27 // pred_check
        %p280 = pneg %p101
      $region30: #{l2_loss.1} parent=27 // pred_check_branch
        %282 = sbr.rel (%p280) target = $region32
      $region31: #{l2_loss.1} parent=27 // pred_region
        _
      $region32: #{l2_loss.1} parent=27 // pred_fallthru
        _
    $region28: #{l2_loss.1} parent=5 // pred_fallthru
      _
    %p283 = scmp.le.s32.totalorder 2, %s8
    // Predicated region
    $region33: #{l2_loss.1} parent=5 // pred_check
      %p284 = pneg %p283
    $region34: #{l2_loss.1} parent=5 // pred_check_branch
      %286 = sbr.rel (%p284) target = $region36
    $region35: #{l2_loss.1} parent=5 // pred_region
      %s287 = ssub.s32 %s8, 2
      // Predicated region
      $region37: #{l2_loss.1} parent=35 // pred_check
        %p288 = pneg %p107
      $region38: #{l2_loss.1} parent=35 // pred_check_branch
        %290 = sbr.rel (%p288) target = $region40
      $region39: #{l2_loss.1} parent=35 // pred_region
        %p291 = scmp.lt.s32.totalorder %s19, 1
        %s292 = scalar_select %p291, %s19, 1
        %p293 = scmp.lt.s32.totalorder %s20, 0
        %s294 = scalar_select %p293, %s20, 0
        %s295 = sadd.s32 %s294, %s292
        %s296 = smul.addr %s295, 8
        %s297 = scalar_lea.vmem %s2, %s296
      $region40: #{l2_loss.1} parent=35 // pred_fallthru
        _
    $region36: #{l2_loss.1} parent=5 // pred_fallthru
      _
  $region6: #{l2_loss.1} parent=0 // loop_footer
    %s12 = sadd.s32 1, %s8
  $region7: #{l2_loss.1} parent=0 // loop_footer_branch
    %7 = sbr.rel target = $region3
  $region8: #{l2_loss.1} parent=0 // loop_exit
    _

</llo_original>
